<compile_context>
chip_gen: v7x
topology: tpu7x:2x2x1
jax: 0.10.0
libtpu: 0.0.40
codegen_flags: <defaults>
</compile_context>

<pallas_src>
import numpy as np
import jax
import jax.numpy as jnp
from jax.experimental import pallas as pl
from jax.experimental.pallas import tpu as pltpu

_MAX_LANES = 2048          # cap on lane-dense last dim (multiple of 128)
_TILE_BYTES = 4 << 20      # ~4 MiB per tile; x2 dbl-buf x (in+out) = ~16 MiB resident


def _modulate_kernel(scale_ref, x_ref, o_ref):
    # scale_ref: SMEM (1,) f32 (scalar-prefetch or SMEM input)
    # x_ref / o_ref: VMEM tile
    o_ref[...] = (x_ref[...] * scale_ref[0]).astype(o_ref.dtype)


def rhythmic_modulate(field_state, scale):
    """field_state: (B, C, H, W) float array.  scale: python/np float scalar."""
    shape = field_state.shape
    dtype = field_state.dtype
    n = int(np.prod(shape))
    scale_arr = jnp.asarray([scale], dtype=jnp.float32)

    if n % 128 == 0:
        # ---- lane-dense, gridded streaming path ----
        lanes = 128
        while lanes * 2 <= _MAX_LANES and n % (lanes * 2) == 0:
            lanes *= 2
        rows = n // lanes
        x2d = field_state.reshape(rows, lanes)

        bytes_per_elem = jnp.dtype(dtype).itemsize
        target_rows = max(1, _TILE_BYTES // (lanes * bytes_per_elem))
        if rows <= 8:
            tile_rows = rows                      # equal to full dim -> allowed
        else:
            tile_rows = min(rows, target_rows)
            tile_rows = max(8, (tile_rows // 8) * 8)   # sublane multiple of 8

        grid = (pl.cdiv(rows, tile_rows),)

        out2d = pl.pallas_call(
            _modulate_kernel,
            out_shape=jax.ShapeDtypeStruct((rows, lanes), dtype),
            grid_spec=pltpu.PrefetchScalarGridSpec(
                num_scalar_prefetch=1,            # scale lives in SMEM
                grid=grid,
                in_specs=[pl.BlockSpec((tile_rows, lanes), lambda i, s: (i, 0))],
                out_specs=pl.BlockSpec((tile_rows, lanes), lambda i, s: (i, 0)),
            ),
            compiler_params=pltpu.CompilerParams(
                dimension_semantics=("parallel",),   # lets v7x shard across 2 TCs
                vmem_limit_bytes=32 << 20,           # headroom on v5e; safe on v7x
            ),
        )(scale_arr, x2d)
        return out2d.reshape(shape)

    # ---- fallback: element count not 128-divisible; single full-array block ----
    B, C, H, W = shape
    x2d = field_state.reshape(B * C * H, W)
    out2d = pl.pallas_call(
        _modulate_kernel,
        out_shape=jax.ShapeDtypeStruct(x2d.shape, dtype),
        in_specs=[
            pl.BlockSpec(memory_space=pltpu.SMEM),   # scale scalar
            pl.BlockSpec(memory_space=pltpu.VMEM),   # field slab
        ],
        out_specs=pl.BlockSpec(memory_space=pltpu.VMEM),
    )(scale_arr, x2d)
    return out2d.reshape(shape)


class RhythmicModulatorJAX:
    """Mirrors the PyTorch module: holds per-band phase state on the host."""

    def __init__(self, field_size, freq_bands=None):
        if freq_bands is None:
            freq_bands = {"theta": 6, "alpha": 10, "beta": 20}
        self.field_size = field_size
        self.freq_bands = freq_bands
        self.phase = {band: 0.0 for band in freq_bands}

    def __call__(self, field_state, dt=0.01):
        # Host-side phase update (exactly as the PyTorch module does).
        for band, freq in self.freq_bands.items():
            self.phase[band] = (self.phase[band] + 2 * np.pi * freq * dt) % (2 * np.pi)
        # Scalar sin-sum hoisted to host (true scalar hoist; the elementwise
        # multiply over the field stays in the kernel).
        scale = float(sum(0.5 * (1.0 + np.sin(p)) for p in self.phase.values()))
        return rhythmic_modulate(field_state, scale)


if __name__ == "__main__":
    key = jax.random.PRNGKey(0)
    B, C, H, W = 2, 4, 16, 16
    x = jax.random.normal(key, (B, C, H, W), dtype=jnp.float32)

    mod = RhythmicModulatorJAX(field_size=(H, W))
    out = mod(x, dt=0.01)
    out = jax.block_until_ready(out)

    # Reference check (pure numpy) against the same phase state.
    ref_scale = sum(0.5 * (1.0 + np.sin(p)) for p in mod.phase.values())
    ref = np.asarray(x) * np.float32(ref_scale)
    np.testing.assert_allclose(np.asarray(out), ref, rtol=1e-5, atol=1e-5)

    print("KERNEL_OK")
</pallas_src>

<mosaic_0001>
module attributes {stable_mosaic.version = 11 : i64} {
  func.func @_modulate_kernel(%arg0: i32, %arg1: memref<1xf32, #tpu.memory_space<smem>>, %arg2: memref<1x2048xf32, #tpu.memory_space<vmem>>, %arg3: memref<1x2048xf32, #tpu.memory_space<vmem>>) attributes {dimension_semantics = [#tpu.dimension_semantics<parallel>], iteration_bounds = array<i64: 1>, scalar_prefetch = 1 : i64, scratch_operands = 0 : i64, tpu.core_type = #tpu.core_type<tc>, window_params = [{transform_indices = @transform_0, window_bounds = array<i64: 1, 2048>}, {transform_indices = @transform_1, window_bounds = array<i64: 1, 2048>}]} {
    %c0 = arith.constant 0 : index
    %c0_0 = arith.constant 0 : index
    %0 = vector.load %arg2[%c0, %c0_0] : memref<1x2048xf32, #tpu.memory_space<vmem>>, vector<1x2048xf32>
    %c0_1 = arith.constant 0 : index
    %1 = memref.load %arg1[%c0_1] : memref<1xf32, #tpu.memory_space<smem>>
    %2 = vector.broadcast %1 : f32 to vector<1x2048xf32>
    %3 = arith.mulf %0, %2 : vector<1x2048xf32>
    %c0_2 = arith.constant 0 : index
    %c0_3 = arith.constant 0 : index
    %4 = vector.load %arg3[%c0_2, %c0_3] : memref<1x2048xf32, #tpu.memory_space<vmem>>, vector<1x2048xf32>
    tpu.vector_store %arg3[%c0_2, %c0_3], %3 {strides = array<i32>} : memref<1x2048xf32, #tpu.memory_space<vmem>>, vector<1x2048xf32>,
    return
  }
  func.func @transform_0(%arg0: i32, %arg1: memref<1xf32, #tpu.memory_space<smem>>) -> (i32, i32) {
    %c0_i32 = arith.constant 0 : i32
    %c0_i32_0 = arith.constant 0 : i32
    return %arg0, %c0_i32 : i32, i32
  }
  func.func @transform_1(%arg0: i32, %arg1: memref<1xf32, #tpu.memory_space<smem>>) -> (i32, i32) {
    %c0_i32 = arith.constant 0 : i32
    %c0_i32_0 = arith.constant 0 : i32
    return %arg0, %c0_i32 : i32, i32
  }
}

</mosaic_0001>

<llo_original>
// kernel: tpu_custom_call.1
$region0: #{tpu_custom_call.1}
  #allocation0 [shape = 'u32[]', space=smem, size = 0x4, offset = 0x4, fixed_abs, tag = 'smem constant byte address 0x4 - core index']
  #allocation1 [shape = 'u32[144,128]{1,0:T(1,128)}', space=vmem, size = 0x12000, scoped, tag = 'internal scratch']
  #allocation2 [shape = 's32[1]{0}', space=sflag, size = 0x4, scoped, tag = 'scoped memory for tpu_custom_call.1']
  #allocation3 [shape = 'f32[1]{0:T(128)S(6)}', space=smem, size = 0x200, scoped, tag = 'prefetched SMEM operand 0']
  %s0 = inlined_call_operand.<no memory space> [shape: f32[1], index: 0, kind: input, shape index: {}]
  %s1 = inlined_call_operand.hbm [shape: f32[1,2048], index: 1, kind: input, shape index: {}]
  %s2 = inlined_call_operand.hbm [shape: f32[1,2048], index: 2, kind: output, shape index: {}]
  %s3 = sld [smem:[#allocation0]]
  $region18: #{tpu_custom_call.1} parent=0
    _
  %s5 = ssub.s32 1, %s3
  %s6 = scalar_select 0, %s5, %s3
  %7 = sst [smem:[#allocation3]] %s0
  $region1: #{tpu_custom_call.1} parent=0
    #allocation4 [shape = 'u8[8192]{0}', space=vmem, size = 0x2000, scoped, tag = 'input window, operand 1, single buffered']
    #allocation5 [shape = 's32[1]{0}', space=sflag, size = 0x4, scoped, tag = 'scoped memory for tpu_custom_call.1']
    #allocation6 [shape = 's32[1]{0}', space=sflag, size = 0x4, scoped, tag = 'scoped memory for tpu_custom_call.1']
    #allocation7 [shape = 'u8[8192]{0}', space=vmem, size = 0x2000, scoped, tag = 'output window, operand 0, single buffered']
    %8 = vsyncpa [#allocation5], 0
    %9 = vsyncpa [#allocation6], 0
    // Predicated region
    $region2: #{tpu_custom_call.1} parent=1 // pred_check
      _
    $region3: #{tpu_custom_call.1} parent=1 // pred_check_branch
      %11 = sbr.rel (0) target = $region5
    $region4: #{tpu_custom_call.1} parent=1 // pred_region
      %s13 = ssub.s32 256, 256
      %14 = vsyncadd [#allocation5], %s13
      %s16 = sshll.u32 [#allocation4], 4
      %s17 = int_to_ptr.vmem [resolvable:$true] %s16
      %19 = dma.hbm_to_vmem [thread:$0]  %s1, 256, %s17, [#allocation5]
    $region5: #{tpu_custom_call.1} parent=1 // pred_fallthru
      _
    // Predicated region
    $region6: #{tpu_custom_call.1} parent=1 // pred_check
      _
    $region7: #{tpu_custom_call.1} parent=1 // pred_check_branch
      %21 = sbr.rel (0) target = $region9
    $region8: #{tpu_custom_call.1} parent=1 // pred_region
      %22 = dma.done [#allocation5], 256
    $region9: #{tpu_custom_call.1} parent=1 // pred_fallthru
      _
    %v23 = vld [vmem:[#allocation4] sm:$0xff]
    %v24 = vld [vmem:[#allocation4 + $0x8] sm:$0xff]
    %s25 = sld [smem:[#allocation3]]
    %v26 = vstv %s25
    %v27 = vmul.f32 %v23, %v26
    %v28 = vmul.f32 %v24, %v26
    %29 = vst [vmem:[#allocation7] sm:$0xff] %v27
    %30 = vst [vmem:[#allocation7 + $0x8] sm:$0xff] %v28
    // Predicated region
    $region10: #{tpu_custom_call.1} parent=1 // pred_check
      _
    $region11: #{tpu_custom_call.1} parent=1 // pred_check_branch
      %32 = sbr.rel (0) target = $region13
    $region12: #{tpu_custom_call.1} parent=1 // pred_region
      %s34 = ssub.s32 256, 256
      %35 = vsyncadd [#allocation6], %s34
      %s37 = sshll.u32 [#allocation7], 4
      %s38 = int_to_ptr.vmem [resolvable:$true] %s37
      %40 = dma.vmem_to_hbm [thread:$0]  %s38, 256, %s2, [#allocation6]
    $region13: #{tpu_custom_call.1} parent=1 // pred_fallthru
      _
    // Predicated region
    $region14: #{tpu_custom_call.1} parent=1 // pred_check
      _
    $region15: #{tpu_custom_call.1} parent=1 // pred_check_branch
      %42 = sbr.rel (0) target = $region17
    $region16: #{tpu_custom_call.1} parent=1 // pred_region
      %43 = dma.done [#allocation6], 256
    $region17: #{tpu_custom_call.1} parent=1 // pred_fallthru
      _
    %44 = vsyncpa [#allocation5], 1
    %45 = vsyncpa [#allocation6], 1

</llo_original>
